<compile_context>
chip_gen: v6e
topology: v6e:2x2x1
jax: 0.10.0
libtpu: 0.0.40
codegen_flags: <defaults>
</compile_context>

<pallas_src>
import jax
import jax.numpy as jnp
from jax.experimental import pallas as pl
from jax.experimental.pallas import tpu as pltpu

LANE = 128
SUBLANE = 8
MAX_BLOCK_ROWS = 1024  # 1024 x 128 f32 = 512 KiB per buffer; ~1.5 MiB VMEM total


def _round_up(a: int, b: int) -> int:
    return ((a + b - 1) // b) * b


def _wgp_sum_kernel(n_ref, x_ref, out_ref, acc_ref):
    """Accumulate sum((x - 1)^2) over the grid; finalize to a (1,1) scalar."""
    i = pl.program_id(0)
    nblocks = pl.num_programs(0)

    @pl.when(i == 0)
    def _():
        acc_ref[...] = jnp.zeros_like(acc_ref)

    x = x_ref[...].astype(jnp.float32)
    d = x - 1.0
    sq = d * d

    # All blocks except the last are fully valid: plain elementwise accumulate (VALU).
    @pl.when(i < nblocks - 1)
    def _():
        acc_ref[...] += sq

    # Only the last block may contain padding; mask it there and do the single
    # full cross-lane/sublane reduction in this epilogue.
    @pl.when(i == nblocks - 1)
    def _():
        block_rows, lane = acc_ref.shape
        row_ids = jax.lax.broadcasted_iota(jnp.int32, (block_rows, lane), 0)
        lane_ids = jax.lax.broadcasted_iota(jnp.int32, (block_rows, lane), 1)
        elem_ids = (i * block_rows + row_ids) * lane + lane_ids
        valid = elem_ids < n_ref[0]
        acc_ref[...] += jnp.where(valid, sq, 0.0)
        out_ref[...] = jnp.sum(acc_ref[...], keepdims=True)


@jax.jit
def wgp_loss(gradient_norm):
    """mean((gradient_norm - 1)^2) via a single-pass Pallas reduction."""
    n = gradient_norm.size
    flat = gradient_norm.reshape(-1)  # keep native dtype; cast to f32 in-kernel

    rows = _round_up(pl.cdiv(n, LANE), SUBLANE)
    block_rows = min(MAX_BLOCK_ROWS, rows)
    padded_rows = _round_up(rows, block_rows)
    padded = padded_rows * LANE
    pad = padded - n
    if pad > 0:  # static; only the tail block is ragged
        flat = jnp.pad(flat, (0, pad))
    x2d = flat.reshape(padded_rows, LANE)
    n_arr = jnp.asarray(n, dtype=jnp.int32).reshape(1)

    grid = (padded_rows // block_rows,)

    total = pl.pallas_call(
        _wgp_sum_kernel,
        out_shape=jax.ShapeDtypeStruct((1, 1), jnp.float32),
        grid_spec=pltpu.PrefetchScalarGridSpec(
            num_scalar_prefetch=0,
            grid=grid,
            in_specs=[
                pl.BlockSpec(memory_space=pltpu.SMEM),                    # n (element count)
                pl.BlockSpec((block_rows, LANE), lambda i: (i, 0)),       # logits / norm tile
            ],
            out_specs=pl.BlockSpec((1, 1), lambda i: (0, 0)),
            scratch_shapes=[pltpu.VMEM((block_rows, LANE), jnp.float32)],
        ),
        compiler_params=pltpu.CompilerParams(
            dimension_semantics=("arbitrary",),
        ),
    )(n_arr, x2d)

    return total[0, 0] / jnp.float32(n)


def wgp_forward(gradient_norm, _unused=None):
    """Mirrors WGP.forward(gradient_norm, _): the second argument is ignored."""
    return wgp_loss(gradient_norm)


def _reference_wgp(x):
    x = x.astype(jnp.float32)
    return jnp.mean((x - 1.0) ** 2)


if __name__ == "__main__":
    key = jax.random.PRNGKey(0)
    # Gradient-norm map consistent with a conv-style NCHW tensor: (N=2, C=4, H=16, W=16)
    gradient_norm = jax.random.normal(key, (2, 4, 16, 16), dtype=jnp.float32) + 1.0
    dummy = jnp.zeros_like(gradient_norm)  # second forward arg is unused by the module

    out = wgp_forward(gradient_norm, dummy)
    out = jax.block_until_ready(out)

    ref = jax.block_until_ready(_reference_wgp(gradient_norm))
    assert jnp.allclose(out, ref, rtol=1e-5, atol=1e-5), (out, ref)

    print("KERNEL_OK")
</pallas_src>

<mosaic_0001>
module attributes {stable_mosaic.version = 11 : i64} {
  func.func @_wgp_sum_kernel(%arg0: i32, %arg1: memref<1xi32, #tpu.memory_space<smem>>, %arg2: memref<16x128xf32, #tpu.memory_space<vmem>>, %arg3: memref<1x1xf32, #tpu.memory_space<vmem>>, %arg4: memref<16x128xf32, #tpu.memory_space<vmem>>) attributes {dimension_semantics = [#tpu.dimension_semantics<arbitrary>], iteration_bounds = array<i64: 1>, scalar_prefetch = 0 : i64, scratch_operands = 1 : i64, tpu.core_type = #tpu.core_type<tc>, window_params = [{transform_indices = @transform_0, window_bounds = array<i64: 1>}, {transform_indices = @transform_1, window_bounds = array<i64: 16, 128>}, {pipeline_mode = #tpu.pipeline_mode<synchronous>, transform_indices = @transform_2, window_bounds = array<i64: 1, 1>}]} {
    %c0_i32 = arith.constant 0 : i32
    %0 = arith.cmpi eq, %arg0, %c0_i32 : i32
    %1 = arith.extui %0 : i1 to i32
    %c0_i32_0 = arith.constant 0 : i32
    %2 = arith.cmpi ne, %1, %c0_i32_0 : i32
    scf.if %2 {
      %cst_6 = arith.constant 0.000000e+00 : f32
      %13 = vector.broadcast %cst_6 : f32 to vector<16x128xf32>
      %c0_7 = arith.constant 0 : index
      %c0_8 = arith.constant 0 : index
      %14 = vector.load %arg4[%c0_7, %c0_8] : memref<16x128xf32, #tpu.memory_space<vmem>>, vector<16x128xf32>
      tpu.vector_store %arg4[%c0_7, %c0_8], %13 {strides = array<i32>} : memref<16x128xf32, #tpu.memory_space<vmem>>, vector<16x128xf32>,
    } else {
    }
    %c0 = arith.constant 0 : index
    %c0_1 = arith.constant 0 : index
    %3 = vector.load %arg2[%c0, %c0_1] : memref<16x128xf32, #tpu.memory_space<vmem>>, vector<16x128xf32>
    %cst = arith.constant 1.000000e+00 : f32
    %4 = vector.broadcast %cst : f32 to vector<16x128xf32>
    %5 = arith.subf %3, %4 : vector<16x128xf32>
    %6 = arith.mulf %5, %5 : vector<16x128xf32>
    %c0_i32_2 = arith.constant 0 : i32
    %7 = arith.cmpi slt, %arg0, %c0_i32_2 : i32
    %8 = arith.extui %7 : i1 to i32
    %c0_i32_3 = arith.constant 0 : i32
    %9 = arith.cmpi ne, %8, %c0_i32_3 : i32
    scf.if %9 {
      %c0_6 = arith.constant 0 : index
      %c0_7 = arith.constant 0 : index
      %13 = vector.load %arg4[%c0_6, %c0_7] : memref<16x128xf32, #tpu.memory_space<vmem>>, vector<16x128xf32>
      %14 = arith.addf %13, %6 : vector<16x128xf32>
      %c0_8 = arith.constant 0 : index
      %c0_9 = arith.constant 0 : index
      %15 = vector.load %arg4[%c0_8, %c0_9] : memref<16x128xf32, #tpu.memory_space<vmem>>, vector<16x128xf32>
      tpu.vector_store %arg4[%c0_8, %c0_9], %14 {strides = array<i32>} : memref<16x128xf32, #tpu.memory_space<vmem>>, vector<16x128xf32>,
    } else {
    }
    %c0_i32_4 = arith.constant 0 : i32
    %10 = arith.cmpi eq, %arg0, %c0_i32_4 : i32
    %11 = arith.extui %10 : i1 to i32
    %c0_i32_5 = arith.constant 0 : i32
    %12 = arith.cmpi ne, %11, %c0_i32_5 : i32
    scf.if %12 {
      %13 = tpu.iota {dimensions = array<i32: 0>} : vector<16x128xi32>
      %14 = tpu.iota {dimensions = array<i32: 1>} : vector<16x128xi32>
      %c16_i32 = arith.constant 16 : i32
      %15 = arith.muli %arg0, %c16_i32 : i32
      %16 = vector.broadcast %15 : i32 to vector<16x128xi32>
      %17 = arith.addi %16, %13 : vector<16x128xi32>
      %c128_i32 = arith.constant 128 : i32
      %18 = vector.broadcast %c128_i32 : i32 to vector<16x128xi32>
      %19 = arith.muli %17, %18 : vector<16x128xi32>
      %20 = arith.addi %19, %14 : vector<16x128xi32>
      %c0_6 = arith.constant 0 : index
      %21 = memref.load %arg1[%c0_6] : memref<1xi32, #tpu.memory_space<smem>>
      %22 = vector.broadcast %21 : i32 to vector<16x128xi32>
      %23 = arith.cmpi slt, %20, %22 : vector<16x128xi32>
      %c0_7 = arith.constant 0 : index
      %c0_8 = arith.constant 0 : index
      %24 = vector.load %arg4[%c0_7, %c0_8] : memref<16x128xf32, #tpu.memory_space<vmem>>, vector<16x128xf32>
      %cst_9 = arith.constant 0.000000e+00 : f32
      %25 = vector.broadcast %cst_9 : f32 to vector<16x128xf32>
      %26 = arith.select %23, %6, %25 : vector<16x128xi1>, vector<16x128xf32>
      %27 = arith.addf %24, %26 : vector<16x128xf32>
      %c0_10 = arith.constant 0 : index
      %c0_11 = arith.constant 0 : index
      %28 = vector.load %arg4[%c0_10, %c0_11] : memref<16x128xf32, #tpu.memory_space<vmem>>, vector<16x128xf32>
      tpu.vector_store %arg4[%c0_10, %c0_11], %27 {strides = array<i32>} : memref<16x128xf32, #tpu.memory_space<vmem>>, vector<16x128xf32>,
      %c0_12 = arith.constant 0 : index
      %c0_13 = arith.constant 0 : index
      %29 = vector.load %arg4[%c0_12, %c0_13] : memref<16x128xf32, #tpu.memory_space<vmem>>, vector<16x128xf32>
      %30 = vector.shape_cast %29 : vector<16x128xf32> to vector<1x16x128xf32>
      %cst_14 = arith.constant dense<0.000000e+00> : vector<1xf32>
      %31 = vector.multi_reduction <add>, %30, %cst_14 [1, 2] : vector<1x16x128xf32> to vector<1xf32>
      %32 = vector.shape_cast %31 : vector<1xf32> to vector<1x1x1xf32>
      %33 = vector.extract %32[0, 0, 0] : f32 from vector<1x1x1xf32>
      %34 = vector.broadcast %33 : f32 to vector<1x1xf32>
      %c0_15 = arith.constant 0 : index
      %c0_16 = arith.constant 0 : index
      %35 = vector.load %arg3[%c0_15, %c0_16] : memref<1x1xf32, #tpu.memory_space<vmem>>, vector<1x1xf32>
      tpu.vector_store %arg3[%c0_15, %c0_16], %34 {strides = array<i32>} : memref<1x1xf32, #tpu.memory_space<vmem>>, vector<1x1xf32>,
    } else {
    }
    return
  }
  func.func @transform_0(%arg0: i32) -> i32 {
    %c0_i32 = arith.constant 0 : i32
    %c0_i32_0 = arith.constant 0 : i32
    return %c0_i32 : i32
  }
  func.func @transform_1(%arg0: i32) -> (i32, i32) {
    %c0_i32 = arith.constant 0 : i32
    %c0_i32_0 = arith.constant 0 : i32
    return %arg0, %c0_i32 : i32, i32
  }
  func.func @transform_2(%arg0: i32) -> (i32, i32) {
    %c0_i32 = arith.constant 0 : i32
    %c0_i32_0 = arith.constant 0 : i32
    %c0_i32_1 = arith.constant 0 : i32
    return %c0_i32, %c0_i32_0 : i32, i32
  }
}

</mosaic_0001>

<llo_original>
// kernel: wgp_loss.1
$region0: #{wgp_loss.1}
  #allocation0 [shape = 'u32[]', space=smem, size = 0x4, offset = 0x4, fixed_abs, tag = 'smem constant byte address 0x4 - core index']
  #allocation1 [shape = 'u32[144,128]{1,0:T(1,128)}', space=vmem, size = 0x12000, scoped, tag = 'internal scratch']
  #allocation2 [shape = 'f32[16,128]{1,0:T(8,128)}', space=vmem, size = 0x2000, scoped, tag = 'scratch operand']
  #allocation3 [shape = 's32[1]{0:T(128)S(6)}', space=smem, size = 0x200, scoped, tag = 'scoped memory for wgp_loss.1']
  %s0 = inlined_call_operand.<no memory space> [shape: s32[1], index: 0, kind: input, shape index: {}]
  %s1 = inlined_call_operand.vmem [shape: f32[16,128], index: 1, kind: input, shape index: {}]
  %s2 = inlined_call_operand.hbm [shape: f32[1,1], index: 2, kind: output, shape index: {}]
  %s3 = sld [smem:[#allocation0]]
  $region30: #{wgp_loss.1} parent=0
    _
  %s5 = ssub.s32 1, %s3
  %s6 = scalar_select 0, %s5, %s3
  %7 = sst [smem:[#allocation3]] %s0
  $region1: #{wgp_loss.1} parent=0
    #allocation4 [shape = 'u8[512]{0}', space=vmem, size = 0x400, scoped, tag = 'output window, operand 0, single buffered']
    #allocation5 [shape = 's32[1]{0}', space=sflag, size = 0x4, scoped, tag = 'scoped memory for wgp_loss.1']
    %8 = vsyncpa [#allocation5], 0
    // Predicated region
    $region2: #{wgp_loss.1} parent=1 // pred_check
      _
    $region3: #{wgp_loss.1} parent=1 // pred_check_branch
      %10 = sbr.rel (0) target = $region5
    $region4: #{wgp_loss.1} parent=1 // pred_region
      _
    $region5: #{wgp_loss.1} parent=1 // pred_fallthru
      _
    // Predicated region
    $region6: #{wgp_loss.1} parent=1 // pred_check
      _
    $region7: #{wgp_loss.1} parent=1 // pred_check_branch
      %12 = sbr.rel (0) target = $region9
    $region8: #{wgp_loss.1} parent=1 // pred_region
      _
    $region9: #{wgp_loss.1} parent=1 // pred_fallthru
      _
    %p13 = scmp.eq.s32.totalorder 0, 0
    // Predicated region
    $region10: #{wgp_loss.1} parent=1 // pred_check
      %p14 = pneg %p13
    $region11: #{wgp_loss.1} parent=1 // pred_check_branch
      %16 = sbr.rel (%p14) target = $region13
    $region12: #{wgp_loss.1} parent=1 // pred_region
      %17 = vst [vmem:[#allocation2] sm:$0xff] 0.0
      %18 = vst [vmem:[#allocation2 + $0x8] sm:$0xff] 0.0
    $region13: #{wgp_loss.1} parent=1 // pred_fallthru
      _
    %v19 = vld [vmem:[%s1] sm:$0xff]
    %v20 = vld [vmem:[%s1 + $0x8] sm:$0xff]
    %v21 = vsub.f32 %v19, 1.0
    %v22 = vsub.f32 %v20, 1.0
    %v23 = vmul.f32 %v21, %v21
    %v24 = vmul.f32 %v22, %v22
    %p25 = scmp.lt.s32.totalorder 0, 0
    // Predicated region
    $region14: #{wgp_loss.1} parent=1 // pred_check
      %p26 = pneg %p25
    $region15: #{wgp_loss.1} parent=1 // pred_check_branch
      %28 = sbr.rel (%p26) target = $region17
    $region16: #{wgp_loss.1} parent=1 // pred_region
      %v29 = vld [vmem:[#allocation2] sm:$0xff]
      %v30 = vld [vmem:[#allocation2 + $0x8] sm:$0xff]
      %v31 = vadd.f32 %v29, %v23
      %v32 = vadd.f32 %v30, %v24
      %33 = vst [vmem:[#allocation2] sm:$0xff] %v31
      %34 = vst [vmem:[#allocation2 + $0x8] sm:$0xff] %v32
    $region17: #{wgp_loss.1} parent=1 // pred_fallthru
      _
    // Predicated region
    $region18: #{wgp_loss.1} parent=1 // pred_check
      %p35 = pneg %p13
    $region19: #{wgp_loss.1} parent=1 // pred_check_branch
      %37 = sbr.rel (%p35) target = $region21
    $region20: #{wgp_loss.1} parent=1 // pred_region
      %v38 = vlaneseq
      %v39 = vshrl.u32 %v38, 7
      %v40 = vadd.s32 %v39, 8
      %v41 = vlaneseq
      %v42 = vand.u32 %v41, 127
      %s43 = smul.u32 0, 16
      %v44 = vstv %s43
      %v45 = vadd.s32 %v44, %v39
      %v46 = vadd.s32 %v44, %v40
      %v47 = vmul.u32 %v45, 128
      %v48 = vmul.u32 %v46, 128
      %v49 = vadd.s32 %v47, %v42
      %v50 = vadd.s32 %v48, %v42
      %s51 = sld [smem:[#allocation3]]
      %v52 = vstv %s51
      %vm53 = vcmp.lt.s32.totalorder %v49, %v52
      %vm54 = vcmp.lt.s32.totalorder %v50, %v52
      %v55 = vld [vmem:[#allocation2] sm:$0xff]
      %v56 = vld [vmem:[#allocation2 + $0x8] sm:$0xff]
      %v57 = vsel %vm53, %v23, 0.0
      %v58 = vsel %vm54, %v24, 0.0
      %v59 = vadd.f32 %v55, %v57
      %v60 = vadd.f32 %v56, %v58
      %61 = vst [vmem:[#allocation2] sm:$0xff] %v59
      %62 = vst [vmem:[#allocation2 + $0x8] sm:$0xff] %v60
      %v63 = vld [vmem:[#allocation2] sm:$0xff]
      %v64 = vld [vmem:[#allocation2 + $0x8] sm:$0xff]
      %v65 = vadd.f32 %v63, %v64
      %66 = vadd.xlane.f32.xlu0 %v65
      %v67 = vpop.xlane.xlu0 %66
      %v68 = vrot.slane %v67, 4
      %v69 = vadd.f32 %v67, %v68
      %v70 = vrot.slane %v69, 2
      %v71 = vadd.f32 %v69, %v70
      %v72 = vrot.slane %v71, 1
      %v73 = vadd.f32 %v71, %v72
      %s74 = vtos %v73
      %v75 = vstv %s74
      %vm76 = vcmask 0
      %77 = vst.msk [vmem:[#allocation4] sm:$0x1] %vm76, %v75
    $region21: #{wgp_loss.1} parent=1 // pred_fallthru
      _
    // Predicated region
    $region22: #{wgp_loss.1} parent=1 // pred_check
      _
    $region23: #{wgp_loss.1} parent=1 // pred_check_branch
      %79 = sbr.rel (0) target = $region25
    $region24: #{wgp_loss.1} parent=1 // pred_region
      %s81 = ssub.s32 16, 16
      %82 = vsyncadd [#allocation5], %s81
      %s84 = sshll.u32 [#allocation4], 4
      %s85 = int_to_ptr.vmem [resolvable:$true] %s84
      %87 = dma.vmem_to_hbm [thread:$0]  %s85, 16, %s2, [#allocation5]
    $region25: #{wgp_loss.1} parent=1 // pred_fallthru
      _
    // Predicated region
    $region26: #{wgp_loss.1} parent=1 // pred_check
      _
    $region27: #{wgp_loss.1} parent=1 // pred_check_branch
      %89 = sbr.rel (0) target = $region29
    $region28: #{wgp_loss.1} parent=1 // pred_region
      %90 = dma.done [#allocation5], 16
    $region29: #{wgp_loss.1} parent=1 // pred_fallthru
      _
    %91 = vsyncpa [#allocation5], 1

</llo_original>
